<compile_context>
chip_gen: v6e
topology: v6e:2x2x1
jax: 0.10.0
libtpu: 0.0.40
codegen_flags: <defaults>
</compile_context>

<pallas_src>
import jax
import jax.numpy as jnp
from jax import lax
from jax.experimental import pallas as pl
from jax.experimental.pallas import tpu as pltpu


def _round_up(v, m):
    return ((v + m - 1) // m) * m


def _pick_tile_f(F):
    """Feature tile: full F for small/odd widths, lane-aligned slices for big F."""
    if F % 128 == 0 and F > 512:
        for cand in (512, 384, 256, 128):
            if F % cand == 0:
                return cand
    return F


def _vmem_estimate(tile_n, tile_f, B_pad, A, itemsize, need_sum, need_max, need_cnt):
    est = 2 * tile_n * tile_f * itemsize                      # x tile (double-buffered)
    est += 2 * tile_n * 4                                     # batch-id tile
    est += 2 * A * B_pad * tile_f * itemsize                  # output block
    est += (int(need_sum) + int(need_max)) * B_pad * tile_f * 4  # accumulators
    if need_cnt:
        est += 2 * B_pad * 4
    if need_sum:
        est += 2 * tile_n * B_pad * 4                         # iota + one-hot temporaries
    return est


def _make_kernel(aggrs, B_pad, need_sum, need_max, need_cnt):
    # Contract the node dimension of both operands (lhs-transposed matmul).
    TN_DIMS = (((0,), (0,)), ((), ()))

    def kernel(*refs):
        i = 0
        if need_max:
            tile_lo_ref, tile_hi_ref = refs[i], refs[i + 1]   # SMEM scalar prefetch
            i += 2
        x_ref = refs[i]; i += 1
        batch_ref = refs[i]; i += 1
        cnt_ref = None
        if need_cnt:
            cnt_ref = refs[i]; i += 1
        out_ref = refs[i]; i += 1
        sum_acc = max_acc = None
        if need_sum:
            sum_acc = refs[i]; i += 1
        if need_max:
            max_acc = refs[i]; i += 1

        t = pl.program_id(1)          # node-tile (reduction) axis

        @pl.when(t == 0)
        def _init():
            if need_sum:
                sum_acc[...] = jnp.zeros_like(sum_acc)
            if need_max:
                max_acc[...] = jnp.full_like(max_acc, -jnp.inf)

        xv = x_ref[...]               # native dtype: bf16 stays bf16 -> fast MXU path
        ids = batch_ref[...]          # (TN, 1) int32; padded rows hold B_pad

        if need_sum:
            # bf16 operands (exact 0/1 one-hot) when x is bf16; fp32 operands kept
            # for genuinely fp32 inputs to preserve precision.
            mm_dtype = xv.dtype if xv.dtype == jnp.bfloat16 else jnp.float32
            cols = lax.broadcasted_iota(jnp.int32, (xv.shape[0], B_pad), 1)
            onehot = (ids == cols).astype(mm_dtype)            # (TN, B_pad)
            sum_acc[...] += lax.dot_general(
                onehot, xv.astype(mm_dtype), TN_DIMS,
                preferred_element_type=jnp.float32)

        if need_max:
            # Only visit graphs actually present in this tile (sorted PyG batch
            # => contiguous range [lo, hi]); unsorted batches still give a
            # correct (min, max) cover, just a wider loop.
            lo = tile_lo_ref[t]
            hi = tile_hi_ref[t]
            neg = jnp.full(xv.shape, -jnp.inf, dtype=xv.dtype)  # hoisted broadcast

            def body(b, carry):
                mb = ids == b                                   # (TN, 1)
                tile_max = jnp.max(jnp.where(mb, xv, neg),
                                   axis=0, keepdims=True)       # (1, TF)
                max_acc[pl.ds(b, 1), :] = jnp.maximum(
                    max_acc[pl.ds(b, 1), :], tile_max.astype(jnp.float32))
                return carry

            lax.fori_loop(lo, hi + 1, body, 0)

        @pl.when(t == pl.num_programs(1) - 1)
        def _finalize():
            cnt = cnt_ref[...] if need_cnt else None            # (B_pad, 1) f32
            for a_idx, aggr in enumerate(aggrs):                # static -> static codegen
                if aggr in ("sum", "add"):
                    piece = sum_acc[...]
                elif aggr == "mean":
                    # scatter(..., reduce='mean') clamps empty-segment count to 1.
                    piece = sum_acc[...] / jnp.maximum(cnt, 1.0)
                else:  # "max": PyG leaves empty segments at 0, not -inf.
                    piece = jnp.where(cnt > 0.0, max_acc[...], 0.0)
                out_ref[a_idx, :, :] = piece.astype(out_ref.dtype)

    return kernel


def global_pooling(x, batch, size=None, aggrs=("add",), tile_n=512, tile_f=None):
    """Pallas implementation of GlobalPooling(aggr=aggrs).forward(x, batch, size)."""
    aggrs = [aggrs] if isinstance(aggrs, str) else list(aggrs)
    assert len(aggrs) > 0
    assert set(aggrs) <= {"sum", "add", "mean", "max"}
    N, F = x.shape
    A = len(aggrs)

    if batch is None:
        # global_*_pool with batch=None reduces all nodes -> [1, F] (keepdim for 2-D x)
        batch = jnp.zeros((N,), dtype=jnp.int32)
        B = 1
    else:
        batch = batch.astype(jnp.int32)
        if size is not None:
            B = int(size)
        else:
            # NOTE: forces a host<->device sync; pass a static `size` for performance.
            B = int(jax.device_get(batch.max())) + 1
    B = max(B, 1)

    if N == 0:
        # Empty input: never launch a zero-step grid with an unwritten output.
        return jnp.zeros((B, F * A), dtype=x.dtype)

    need_sum = any(a in ("sum", "add", "mean") for a in aggrs)
    need_max = "max" in aggrs
    need_cnt = any(a in ("mean", "max") for a in aggrs)

    # Graph axis padded to a lane-width multiple -> lane-dense one-hot for the MXU.
    B_pad = _round_up(B, 128)

    itemsize = x.dtype.itemsize
    row_align = 8 * max(1, 4 // itemsize)          # 8 rows for f32, 16 for bf16

    # Big node tiles amortize per-grid-step overhead; clamp for tiny N.
    tile_n = int(min(tile_n, _round_up(N, row_align)))
    tile_n = max(row_align, _round_up(tile_n, row_align))
    tf = _pick_tile_f(F) if tile_f is None else int(tile_f)
    assert F % tf == 0

    # Shape-derived VMEM budget with generation-aware headroom.
    try:
        phys_vmem = int(pltpu.get_tpu_info().vmem_capacity_bytes)
    except Exception:
        phys_vmem = 64 * 1024 * 1024               # conservative (v7x per-TC VMEM)
    budget = int(0.75 * phys_vmem)
    while (_vmem_estimate(tile_n, tf, B_pad, A, itemsize,
                          need_sum, need_max, need_cnt) > budget and tile_n > 64):
        tile_n = max(64, _round_up(tile_n // 2, row_align))
    # TODO(synk): for very large B_pad (>~512) switch the segment sum to a
    # sorted-segment windowed contraction (scalar-prefetch graph ranges) so the
    # one-hot matmul stops scaling as O(N * B_pad * F).
    est = _vmem_estimate(tile_n, tf, B_pad, A, itemsize, need_sum, need_max, need_cnt)
    vmem_limit = min(max(int(1.5 * est), 32 * 1024 * 1024), budget)

    # Pad the node axis; padded rows carry id == B_pad so they match no graph.
    pad_n = (-N) % tile_n
    x_p = jnp.pad(x, ((0, pad_n), (0, 0))) if pad_n else x
    batch_pad = jnp.pad(batch, (0, pad_n), constant_values=B_pad) if pad_n else batch
    Np = N + pad_n
    batch2d = batch_pad.reshape(Np, 1)
    num_n_tiles = Np // tile_n
    num_f_tiles = F // tf

    call_args = []
    if need_max:
        # Per-tile [min, max] graph id present (pad rows neutral for both).
        hi_src = jnp.pad(batch, (0, pad_n), constant_values=0) if pad_n else batch
        tile_lo = batch_pad.reshape(num_n_tiles, tile_n).min(axis=1).astype(jnp.int32)
        tile_hi = jnp.minimum(hi_src.reshape(num_n_tiles, tile_n).max(axis=1),
                              B_pad - 1).astype(jnp.int32)
        call_args += [tile_lo, tile_hi]
    call_args += [x_p, batch2d]
    if need_cnt:
        # Counts depend only on `batch`: compute once outside, read in the epilogue.
        cnt = jax.ops.segment_sum(jnp.ones((N,), jnp.float32), batch, num_segments=B)
        cnt = jnp.pad(cnt, (0, B_pad - B)).reshape(B_pad, 1)
        call_args.append(cnt)

    if need_max:   # index_maps receive the scalar-prefetch refs as trailing args
        x_map = lambda f, t, lo, hi: (t, f)
        b_map = lambda f, t, lo, hi: (t, 0)
        c_map = lambda f, t, lo, hi: (0, 0)
        o_map = lambda f, t, lo, hi: (0, 0, f)
    else:
        x_map = lambda f, t: (t, f)
        b_map = lambda f, t: (t, 0)
        c_map = lambda f, t: (0, 0)
        o_map = lambda f, t: (0, 0, f)

    if (not need_max) and num_n_tiles >= 3:
        # Sum-only config is HBM-bound: a third input buffer hides DMA latency.
        x_spec = pl.BlockSpec((tile_n, tf), x_map, pipeline_mode=pl.Buffered(3))
    else:
        x_spec = pl.BlockSpec((tile_n, tf), x_map)

    in_specs = [x_spec, pl.BlockSpec((tile_n, 1), b_map)]
    if need_cnt:
        in_specs.append(pl.BlockSpec((B_pad, 1), c_map))

    scratch_shapes = []
    if need_sum:
        scratch_shapes.append(pltpu.VMEM((B_pad, tf), jnp.float32))   # per-graph sum
    if need_max:
        scratch_shapes.append(pltpu.VMEM((B_pad, tf), jnp.float32))   # per-graph max

    kernel = _make_kernel(tuple(aggrs), B_pad, need_sum, need_max, need_cnt)

    out3 = pl.pallas_call(
        kernel,
        out_shape=jax.ShapeDtypeStruct((A, B_pad, F), x.dtype),
        grid_spec=pltpu.PrefetchScalarGridSpec(
            num_scalar_prefetch=2 if need_max else 0,
            grid=(num_f_tiles, num_n_tiles),   # (parallel feature tiles, node reduction)
            in_specs=in_specs,
            out_specs=pl.BlockSpec((A, B_pad, tf), o_map),
            scratch_shapes=scratch_shapes,
        ),
        compiler_params=pltpu.CompilerParams(
            dimension_semantics=("parallel", "arbitrary"),
            vmem_limit_bytes=vmem_limit,
        ),
    )(*call_args)

    out3 = out3[:, :B, :]
    if A == 1:
        return out3[0]
    # (A, B, F) -> (B, A*F): concat in aggrs order along the feature axis.
    return jnp.transpose(out3, (1, 0, 2)).reshape(B, A * F)


def _reference(x, batch, B, aggrs):
    """Plain-JAX reference of the PyTorch forward (scatter add/mean/max)."""
    seg_sum = jax.ops.segment_sum(x, batch, num_segments=B)
    cnt = jax.ops.segment_sum(jnp.ones((x.shape[0],), x.dtype), batch,
                              num_segments=B)[:, None]
    seg_mean = seg_sum / jnp.maximum(cnt, 1.0)
    seg_max = jax.ops.segment_max(x, batch, num_segments=B)
    seg_max = jnp.where(cnt > 0, seg_max, 0.0)   # PyG scatter('max'): empty segments -> 0
    outs = []
    for a in aggrs:
        if a in ("sum", "add"):
            outs.append(seg_sum)
        elif a == "mean":
            outs.append(seg_mean)
        elif a == "max":
            outs.append(seg_max)
    return outs[0] if len(outs) == 1 else jnp.concatenate(outs, axis=-1)


if __name__ == "__main__":
    key = jax.random.PRNGKey(0)
    N, F, B = 48, 32, 3
    x = jax.random.normal(key, (N, F), dtype=jnp.float32)
    # PyG-style batch vector: nodes sorted by graph, sizes 20 / 12 / 16.
    batch = jnp.concatenate([
        jnp.full((20,), 0, jnp.int32),
        jnp.full((12,), 1, jnp.int32),
        jnp.full((16,), 2, jnp.int32),
    ])

    # (aggrs, dtype, tile_n (None -> default), size)
    tests = [
        (["add", "mean", "max"], jnp.float32, None, B),      # single node tile
        (["add", "mean", "max"], jnp.float32, 16, B),        # multi-tile accumulation
        (["add"], jnp.float32, 16, B),                        # sum-only (Buffered(3) path)
        (["max"], jnp.float32, 16, B),                        # max-only (no sum scratch)
        (["add", "mean", "max"], jnp.float32, 16, B + 2),     # trailing empty graphs
        (["add", "mean", "max"], jnp.bfloat16, 16, B),        # bf16 MXU path
    ]

    for aggrs_t, dt, tn, Bt in tests:
        xt = x.astype(dt)
        ref = _reference(xt.astype(jnp.float32), batch, Bt, aggrs_t)
        kwargs = {} if tn is None else {"tile_n": tn}
        out = jax.block_until_ready(
            global_pooling(xt, batch, size=Bt, aggrs=aggrs_t, **kwargs))
        assert out.shape == (Bt, F * len(aggrs_t)), (out.shape, aggrs_t)
        tol_a, tol_r = (1e-2, 2e-2) if dt == jnp.bfloat16 else (1e-5, 1e-5)
        assert jnp.allclose(out.astype(jnp.float32), ref, atol=tol_a, rtol=tol_r), \
            ("mismatch vs reference", aggrs_t, dt, tn, Bt)

    # batch=None path (global_mean_pool over all nodes -> [1, F]).
    out_none = jax.block_until_ready(global_pooling(x, None, aggrs=["mean"]))
    assert out_none.shape == (1, F)
    assert jnp.allclose(out_none, x.mean(axis=0, keepdims=True), atol=1e-5, rtol=1e-5)

    print("KERNEL_OK")
</pallas_src>

<mosaic_0001>
module attributes {stable_mosaic.version = 11 : i64} {
  func.func @kernel(%arg0: i32, %arg1: i32, %arg2: memref<1xi32, #tpu.memory_space<smem>>, %arg3: memref<1xi32, #tpu.memory_space<smem>>, %arg4: memref<48x32xf32, #tpu.memory_space<vmem>>, %arg5: memref<48x1xi32, #tpu.memory_space<vmem>>, %arg6: memref<128x1xf32, #tpu.memory_space<vmem>>, %arg7: memref<3x128x32xf32, #tpu.memory_space<vmem>>, %arg8: memref<128x32xf32, #tpu.memory_space<vmem>>, %arg9: memref<128x32xf32, #tpu.memory_space<vmem>>) attributes {dimension_semantics = [#tpu.dimension_semantics<parallel>, #tpu.dimension_semantics<arbitrary>], iteration_bounds = array<i64: 1, 1>, scalar_prefetch = 2 : i64, scratch_operands = 2 : i64, tpu.core_type = #tpu.core_type<tc>, window_params = [{transform_indices = @transform_0, window_bounds = array<i64: 48, 32>}, {transform_indices = @transform_1, window_bounds = array<i64: 48, 1>}, {pipeline_mode = #tpu.pipeline_mode<synchronous>, transform_indices = @transform_2, window_bounds = array<i64: 128, 1>}, {transform_indices = @transform_3, window_bounds = array<i64: 3, 128, 32>}]} {
    %c0_i32 = arith.constant 0 : i32
    %0 = arith.cmpi eq, %arg1, %c0_i32 : i32
    %1 = arith.extui %0 : i1 to i32
    %c0_i32_0 = arith.constant 0 : i32
    %2 = arith.cmpi ne, %1, %c0_i32_0 : i32
    scf.if %2 {
      %cst_13 = arith.constant 0.000000e+00 : f32
      %25 = vector.broadcast %cst_13 : f32 to vector<128x32xf32>
      %c0_14 = arith.constant 0 : index
      %c0_15 = arith.constant 0 : index
      %26 = vector.load %arg8[%c0_14, %c0_15] : memref<128x32xf32, #tpu.memory_space<vmem>>, vector<128x32xf32>
      tpu.vector_store %arg8[%c0_14, %c0_15], %25 {strides = array<i32>} : memref<128x32xf32, #tpu.memory_space<vmem>>, vector<128x32xf32>,
      %cst_16 = arith.constant 0xFF800000 : f32
      %27 = vector.broadcast %cst_16 : f32 to vector<128x32xf32>
      %c0_17 = arith.constant 0 : index
      %c0_18 = arith.constant 0 : index
      %28 = vector.load %arg9[%c0_17, %c0_18] : memref<128x32xf32, #tpu.memory_space<vmem>>, vector<128x32xf32>
      tpu.vector_store %arg9[%c0_17, %c0_18], %27 {strides = array<i32>} : memref<128x32xf32, #tpu.memory_space<vmem>>, vector<128x32xf32>,
    } else {
    }
    %c0 = arith.constant 0 : index
    %c0_1 = arith.constant 0 : index
    %3 = vector.load %arg4[%c0, %c0_1] : memref<48x32xf32, #tpu.memory_space<vmem>>, vector<48x32xf32>
    %c0_2 = arith.constant 0 : index
    %c0_3 = arith.constant 0 : index
    %4 = vector.load %arg5[%c0_2, %c0_3] : memref<48x1xi32, #tpu.memory_space<vmem>>, vector<48x1xi32>
    %5 = tpu.iota {dimensions = array<i32: 1>} : vector<48x128xi32>
    %6 = vector.broadcast %4 : vector<48x1xi32> to vector<48x128xi32>
    %7 = arith.cmpi eq, %6, %5 : vector<48x128xi32>
    %8 = arith.extui %7 : vector<48x128xi1> to vector<48x128xi32>
    %9 = arith.sitofp %8 : vector<48x128xi32> to vector<48x128xf32>
    %c0_4 = arith.constant 0 : index
    %c0_5 = arith.constant 0 : index
    %10 = vector.load %arg8[%c0_4, %c0_5] : memref<128x32xf32, #tpu.memory_space<vmem>>, vector<128x32xf32>
    %cst = arith.constant dense<0.000000e+00> : vector<128x32xf32>
    %11 = tpu.matmul %9, %3, %cst {dimension_numbers = #tpu.dot_dimension_numbers<[0], [0], [1], [1], [0, 1, 1, 1], [], []>} : vector<48x128xf32>, vector<48x32xf32>, vector<128x32xf32> -> vector<128x32xf32>
    %12 = arith.addf %10, %11 : vector<128x32xf32>
    %c0_6 = arith.constant 0 : index
    %c0_7 = arith.constant 0 : index
    %13 = vector.load %arg8[%c0_6, %c0_7] : memref<128x32xf32, #tpu.memory_space<vmem>>, vector<128x32xf32>
    tpu.vector_store %arg8[%c0_6, %c0_7], %12 {strides = array<i32>} : memref<128x32xf32, #tpu.memory_space<vmem>>, vector<128x32xf32>,
    %14 = arith.index_cast %arg1 : i32 to index
    %15 = memref.load %arg2[%14] : memref<1xi32, #tpu.memory_space<smem>>
    %16 = arith.index_cast %arg1 : i32 to index
    %17 = memref.load %arg3[%16] : memref<1xi32, #tpu.memory_space<smem>>
    %cst_8 = arith.constant 0xFF800000 : f32
    %18 = vector.broadcast %cst_8 : f32 to vector<48x32xf32>
    %c1_i32 = arith.constant 1 : i32
    %19 = arith.addi %17, %c1_i32 : i32
    %c0_i32_9 = arith.constant 0 : i32
    %20 = arith.subi %19, %15 : i32
    %21 = arith.addi %15, %20 : i32
    %c1_i32_10 = arith.constant 1 : i32
    scf.for %arg10 = %15 to %21 step %c1_i32_10  : i32 {
      %25 = vector.broadcast %arg10 : i32 to vector<48x1xi32>
      %26 = arith.cmpi eq, %4, %25 : vector<48x1xi32>
      %27 = vector.shape_cast %26 : vector<48x1xi1> to vector<48x1xi1>
      %28 = vector.broadcast %27 : vector<48x1xi1> to vector<48x32xi1>
      %29 = arith.select %28, %3, %18 : vector<48x32xi1>, vector<48x32xf32>
      %cst_13 = arith.constant dense<0xFF800000> : vector<32xf32>
      %30 = vector.multi_reduction <maximumf>, %29, %cst_13 [0] : vector<48x32xf32> to vector<32xf32>
      %31 = vector.shape_cast %30 : vector<32xf32> to vector<1x32xf32>
      %32 = arith.index_cast %arg10 : i32 to index
      %c0_14 = arith.constant 0 : index
      %33 = vector.load %arg9[%32, %c0_14] : memref<128x32xf32, #tpu.memory_space<vmem>>, vector<1x32xf32>
      %34 = arith.maximumf %33, %31 : vector<1x32xf32>
      %35 = arith.index_cast %arg10 : i32 to index
      %c0_15 = arith.constant 0 : index
      %36 = vector.load %arg9[%35, %c0_15] : memref<128x32xf32, #tpu.memory_space<vmem>>, vector<1x32xf32>
      tpu.vector_store %arg9[%35, %c0_15], %34 {strides = array<i32>} : memref<128x32xf32, #tpu.memory_space<vmem>>, vector<1x32xf32>,
    }
    %c0_i32_11 = arith.constant 0 : i32
    %22 = arith.cmpi eq, %arg1, %c0_i32_11 : i32
    %23 = arith.extui %22 : i1 to i32
    %c0_i32_12 = arith.constant 0 : i32
    %24 = arith.cmpi ne, %23, %c0_i32_12 : i32
    scf.if %24 {
      %c0_13 = arith.constant 0 : index
      %c0_14 = arith.constant 0 : index
      %25 = vector.load %arg6[%c0_13, %c0_14] : memref<128x1xf32, #tpu.memory_space<vmem>>, vector<128x1xf32>
      %c0_15 = arith.constant 0 : index
      %c0_16 = arith.constant 0 : index
      %26 = vector.load %arg8[%c0_15, %c0_16] : memref<128x32xf32, #tpu.memory_space<vmem>>, vector<128x32xf32>
      %c0_17 = arith.constant 0 : index
      %c0_18 = arith.constant 0 : index
      %c0_19 = arith.constant 0 : index
      %27 = vector.load %arg7[%c0_17, %c0_18, %c0_19] : memref<3x128x32xf32, #tpu.memory_space<vmem>>, vector<1x128x32xf32>
      %28 = vector.shape_cast %27 : vector<1x128x32xf32> to vector<128x32xf32>
      %29 = vector.shape_cast %26 : vector<128x32xf32> to vector<1x128x32xf32>
      tpu.vector_store %arg7[%c0_17, %c0_18, %c0_19], %29 {strides = array<i32>} : memref<3x128x32xf32, #tpu.memory_space<vmem>>, vector<1x128x32xf32>,
      %c0_20 = arith.constant 0 : index
      %c0_21 = arith.constant 0 : index
      %30 = vector.load %arg8[%c0_20, %c0_21] : memref<128x32xf32, #tpu.memory_space<vmem>>, vector<128x32xf32>
      %cst_22 = arith.constant 1.000000e+00 : f32
      %31 = vector.broadcast %cst_22 : f32 to vector<128x1xf32>
      %32 = arith.maximumf %25, %31 : vector<128x1xf32>
      %33 = vector.broadcast %32 : vector<128x1xf32> to vector<128x32xf32>
      %34 = arith.divf %30, %33 : vector<128x32xf32>
      %c1 = arith.constant 1 : index
      %c0_23 = arith.constant 0 : index
      %c0_24 = arith.constant 0 : index
      %35 = vector.load %arg7[%c1, %c0_23, %c0_24] : memref<3x128x32xf32, #tpu.memory_space<vmem>>, vector<1x128x32xf32>
      %36 = vector.shape_cast %35 : vector<1x128x32xf32> to vector<128x32xf32>
      %37 = vector.shape_cast %34 : vector<128x32xf32> to vector<1x128x32xf32>
      tpu.vector_store %arg7[%c1, %c0_23, %c0_24], %37 {strides = array<i32>} : memref<3x128x32xf32, #tpu.memory_space<vmem>>, vector<1x128x32xf32>,
      %cst_25 = arith.constant 0.000000e+00 : f32
      %38 = vector.broadcast %cst_25 : f32 to vector<128x1xf32>
      %39 = arith.cmpf ogt, %25, %38 : vector<128x1xf32>
      %c0_26 = arith.constant 0 : index
      %c0_27 = arith.constant 0 : index
      %40 = vector.load %arg9[%c0_26, %c0_27] : memref<128x32xf32, #tpu.memory_space<vmem>>, vector<128x32xf32>
      %cst_28 = arith.constant 0.000000e+00 : f32
      %41 = vector.shape_cast %39 : vector<128x1xi1> to vector<128x1xi1>
      %42 = vector.broadcast %41 : vector<128x1xi1> to vector<128x32xi1>
      %43 = vector.broadcast %cst_28 : f32 to vector<128x32xf32>
      %44 = arith.select %42, %40, %43 : vector<128x32xi1>, vector<128x32xf32>
      %c2 = arith.constant 2 : index
      %c0_29 = arith.constant 0 : index
      %c0_30 = arith.constant 0 : index
      %45 = vector.load %arg7[%c2, %c0_29, %c0_30] : memref<3x128x32xf32, #tpu.memory_space<vmem>>, vector<1x128x32xf32>
      %46 = vector.shape_cast %45 : vector<1x128x32xf32> to vector<128x32xf32>
      %47 = vector.shape_cast %44 : vector<128x32xf32> to vector<1x128x32xf32>
      tpu.vector_store %arg7[%c2, %c0_29, %c0_30], %47 {strides = array<i32>} : memref<3x128x32xf32, #tpu.memory_space<vmem>>, vector<1x128x32xf32>,
    } else {
    }
    return
  }
  func.func @transform_0(%arg0: i32, %arg1: i32, %arg2: memref<1xi32, #tpu.memory_space<smem>>, %arg3: memref<1xi32, #tpu.memory_space<smem>>) -> (i32, i32) {
    %c0_i32 = arith.constant 0 : i32
    return %arg1, %arg0 : i32, i32
  }
  func.func @transform_1(%arg0: i32, %arg1: i32, %arg2: memref<1xi32, #tpu.memory_space<smem>>, %arg3: memref<1xi32, #tpu.memory_space<smem>>) -> (i32, i32) {
    %c0_i32 = arith.constant 0 : i32
    %c0_i32_0 = arith.constant 0 : i32
    return %arg1, %c0_i32 : i32, i32
  }
  func.func @transform_2(%arg0: i32, %arg1: i32, %arg2: memref<1xi32, #tpu.memory_space<smem>>, %arg3: memref<1xi32, #tpu.memory_space<smem>>) -> (i32, i32) {
    %c0_i32 = arith.constant 0 : i32
    %c0_i32_0 = arith.constant 0 : i32
    %c0_i32_1 = arith.constant 0 : i32
    return %c0_i32, %c0_i32_0 : i32, i32
  }
  func.func @transform_3(%arg0: i32, %arg1: i32, %arg2: memref<1xi32, #tpu.memory_space<smem>>, %arg3: memref<1xi32, #tpu.memory_space<smem>>) -> (i32, i32, i32) {
    %c0_i32 = arith.constant 0 : i32
    %c0_i32_0 = arith.constant 0 : i32
    %c0_i32_1 = arith.constant 0 : i32
    return %c0_i32, %c0_i32_0, %arg0 : i32, i32, i32
  }
}

</mosaic_0001>

<llo_original>
// kernel: tpu_custom_call.1
$region0: #{tpu_custom_call.1}
  #allocation0 [shape = 'u32[]', space=smem, size = 0x4, offset = 0x4, fixed_abs, tag = 'smem constant byte address 0x4 - core index']
  #allocation1 [shape = 'u32[144,128]{1,0:T(1,128)}', space=vmem, size = 0x12000, scoped, tag = 'internal scratch']
  #allocation2 [shape = 'f32[128,32]{1,0:T(8,128)}', space=vmem, size = 0x10000, scoped, tag = 'scratch operand']
  #allocation3 [shape = 'f32[128,32]{1,0:T(8,128)}', space=vmem, size = 0x10000, scoped, tag = 'scratch operand']
  #allocation4 [shape = 's32[1]{0}', space=sflag, size = 0x4, scoped, tag = 'scoped memory for tpu_custom_call.1']
  #allocation5 [shape = 's32[1]{0:T(128)S(6)}', space=smem, size = 0x200, scoped, tag = 'prefetched SMEM operand 0']
  #allocation6 [shape = 's32[1]{0:T(128)S(6)}', space=smem, size = 0x200, scoped, tag = 'prefetched SMEM operand 1']
  %s0 = inlined_call_operand.<no memory space> [shape: s32[1], index: 0, kind: input, shape index: {}]
  %s1 = inlined_call_operand.<no memory space> [shape: s32[1], index: 1, kind: input, shape index: {}]
  %s2 = inlined_call_operand.vmem [shape: f32[48,32], index: 2, kind: input, shape index: {}]
  %s3 = inlined_call_operand.vmem [shape: s32[48,1], index: 3, kind: input, shape index: {}]
  %s4 = inlined_call_operand.vmem [shape: f32[128,1], index: 4, kind: input, shape index: {}]
  %s5 = inlined_call_operand.vmem [shape: f32[3,128,32], index: 5, kind: output, shape index: {}]
  %s6 = sld [smem:[#allocation0]]
  $region37: #{tpu_custom_call.1} parent=0
    _
  %s8 = ssub.s32 1, %s6
  %s9 = scalar_select 0, %s8, %s6
  %10 = sst [smem:[#allocation5]] %s0
  %11 = sst [smem:[#allocation6]] %s1
  // Predicated region
  $region2: #{tpu_custom_call.1} parent=0 // pred_check
    _
  $region3: #{tpu_custom_call.1} parent=0 // pred_check_branch
    %13 = sbr.rel (0) target = $region5
  $region4: #{tpu_custom_call.1} parent=0 // pred_region
    _
  $region5: #{tpu_custom_call.1} parent=0 // pred_fallthru
    _
  // Predicated region
  $region6: #{tpu_custom_call.1} parent=0 // pred_check
    _
  $region7: #{tpu_custom_call.1} parent=0 // pred_check_branch
    %15 = sbr.rel (0) target = $region9
  $region8: #{tpu_custom_call.1} parent=0 // pred_region
    _
  $region9: #{tpu_custom_call.1} parent=0 // pred_fallthru
    _
  // Predicated region
  $region10: #{tpu_custom_call.1} parent=0 // pred_check
    _
  $region11: #{tpu_custom_call.1} parent=0 // pred_check_branch
    %17 = sbr.rel (0) target = $region13
  $region12: #{tpu_custom_call.1} parent=0 // pred_region
    _
  $region13: #{tpu_custom_call.1} parent=0 // pred_fallthru
    _
  %p18 = scmp.eq.s32.totalorder 0, 0
  // Predicated region
  $region14: #{tpu_custom_call.1} parent=0 // pred_check
    %p19 = pneg %p18
  $region15: #{tpu_custom_call.1} parent=0 // pred_check_branch
    %21 = sbr.rel (%p19) target = $region17
  $region16: #{tpu_custom_call.1} parent=0 // pred_region
    %vm22 = vcmask 261120
    %23 = vst.msk [vmem:[#allocation2] sm:$0xff] %vm22, 0.0
    %24 = vst.msk [vmem:[#allocation2 + $0x8] sm:$0xff] %vm22, 0.0
    %25 = vst.msk [vmem:[#allocation2 + $0x10] sm:$0xff] %vm22, 0.0
    %26 = vst.msk [vmem:[#allocation2 + $0x18] sm:$0xff] %vm22, 0.0
    %27 = vst.msk [vmem:[#allocation2 + $0x20] sm:$0xff] %vm22, 0.0
    %28 = vst.msk [vmem:[#allocation2 + $0x28] sm:$0xff] %vm22, 0.0
    %29 = vst.msk [vmem:[#allocation2 + $0x30] sm:$0xff] %vm22, 0.0
    %30 = vst.msk [vmem:[#allocation2 + $0x38] sm:$0xff] %vm22, 0.0
    %31 = vst.msk [vmem:[#allocation2 + $0x40] sm:$0xff] %vm22, 0.0
    %32 = vst.msk [vmem:[#allocation2 + $0x48] sm:$0xff] %vm22, 0.0
    %33 = vst.msk [vmem:[#allocation2 + $0x50] sm:$0xff] %vm22, 0.0
    %34 = vst.msk [vmem:[#allocation2 + $0x58] sm:$0xff] %vm22, 0.0
    %35 = vst.msk [vmem:[#allocation2 + $0x60] sm:$0xff] %vm22, 0.0
    %36 = vst.msk [vmem:[#allocation2 + $0x68] sm:$0xff] %vm22, 0.0
    %37 = vst.msk [vmem:[#allocation2 + $0x70] sm:$0xff] %vm22, 0.0
    %38 = vst.msk [vmem:[#allocation2 + $0x78] sm:$0xff] %vm22, 0.0
    %39 = vst.msk [vmem:[#allocation3] sm:$0xff] %vm22, -inf
    %40 = vst.msk [vmem:[#allocation3 + $0x8] sm:$0xff] %vm22, -inf
    %41 = vst.msk [vmem:[#allocation3 + $0x10] sm:$0xff] %vm22, -inf
    %42 = vst.msk [vmem:[#allocation3 + $0x18] sm:$0xff] %vm22, -inf
    %43 = vst.msk [vmem:[#allocation3 + $0x20] sm:$0xff] %vm22, -inf
    %44 = vst.msk [vmem:[#allocation3 + $0x28] sm:$0xff] %vm22, -inf
    %45 = vst.msk [vmem:[#allocation3 + $0x30] sm:$0xff] %vm22, -inf
    %46 = vst.msk [vmem:[#allocation3 + $0x38] sm:$0xff] %vm22, -inf
    %47 = vst.msk [vmem:[#allocation3 + $0x40] sm:$0xff] %vm22, -inf
    %48 = vst.msk [vmem:[#allocation3 + $0x48] sm:$0xff] %vm22, -inf
    %49 = vst.msk [vmem:[#allocation3 + $0x50] sm:$0xff] %vm22, -inf
    %50 = vst.msk [vmem:[#allocation3 + $0x58] sm:$0xff] %vm22, -inf
    %51 = vst.msk [vmem:[#allocation3 + $0x60] sm:$0xff] %vm22, -inf
    %52 = vst.msk [vmem:[#allocation3 + $0x68] sm:$0xff] %vm22, -inf
    %53 = vst.msk [vmem:[#allocation3 + $0x70] sm:$0xff] %vm22, -inf
    %54 = vst.msk [vmem:[#allocation3 + $0x78] sm:$0xff] %vm22, -inf
  $region17: #{tpu_custom_call.1} parent=0 // pred_fallthru
    _
  %v55 = vld [vmem:[%s2] sm:$0xff]
  %v56 = vld [vmem:[%s2 + $0x8] sm:$0xff]
  %v57 = vld [vmem:[%s2 + $0x10] sm:$0xff]
  %v58 = vld [vmem:[%s2 + $0x18] sm:$0xff]
  %v59 = vld [vmem:[%s2 + $0x20] sm:$0xff]
  %v60 = vld [vmem:[%s2 + $0x28] sm:$0xff]
  %v61 = vld [vmem:[%s3] sm:$0xff]
  %v62 = vld [vmem:[%s3 + $0x8] sm:$0xff]
  %v63 = vld [vmem:[%s3 + $0x10] sm:$0xff]
  %v64 = vld [vmem:[%s3 + $0x18] sm:$0xff]
  %v65 = vld [vmem:[%s3 + $0x20] sm:$0xff]
  %v66 = vld [vmem:[%s3 + $0x28] sm:$0xff]
  %v67 = vlaneseq
  %v68 = vand.u32 %v67, 127
  %69 = vset.pattern.permute.xlu0 0
  %70 = vperm.xlu0 %69, %v61
  %v71 = vpop.permute.xlu0 %70
  %72 = vset.pattern.permute.xlu0 0
  %73 = vperm.xlu0 %72, %v62
  %v74 = vpop.permute.xlu0 %73
  %75 = vset.pattern.permute.xlu0 0
  %76 = vperm.xlu0 %75, %v63
  %v77 = vpop.permute.xlu0 %76
  %78 = vset.pattern.permute.xlu0 0
  %79 = vperm.xlu0 %78, %v64
  %v80 = vpop.permute.xlu0 %79
  %81 = vset.pattern.permute.xlu0 0
  %82 = vperm.xlu0 %81, %v65
  %v83 = vpop.permute.xlu0 %82
  %84 = vset.pattern.permute.xlu0 0
  %85 = vperm.xlu0 %84, %v66
  %v86 = vpop.permute.xlu0 %85
  %vm87 = vcmp.eq.s32.totalorder %v71, %v68
  %vm88 = vcmp.eq.s32.totalorder %v74, %v68
  %vm89 = vcmp.eq.s32.totalorder %v77, %v68
  %vm90 = vcmp.eq.s32.totalorder %v80, %v68
  %vm91 = vcmp.eq.s32.totalorder %v83, %v68
  %vm92 = vcmp.eq.s32.totalorder %v86, %v68
  %v93 = vsel %vm87, 1, 0
  %v94 = vsel %vm88, 1, 0
  %v95 = vsel %vm89, 1, 0
  %v96 = vsel %vm90, 1, 0
  %v97 = vsel %vm91, 1, 0
  %v98 = vsel %vm92, 1, 0
  %v99 = vcvt.s32.f32 %v93
  %v100 = vcvt.s32.f32 %v94
  %v101 = vcvt.s32.f32 %v95
  %v102 = vcvt.s32.f32 %v96
  %v103 = vcvt.s32.f32 %v97
  %v104 = vcvt.s32.f32 %v98
  %v105 = vld [vmem:[#allocation2] sm:$0xff]
  %v106 = vld [vmem:[#allocation2 + $0x8] sm:$0xff]
  %v107 = vld [vmem:[#allocation2 + $0x10] sm:$0xff]
  %v108 = vld [vmem:[#allocation2 + $0x18] sm:$0xff]
  %v109 = vld [vmem:[#allocation2 + $0x20] sm:$0xff]
  %v110 = vld [vmem:[#allocation2 + $0x28] sm:$0xff]
  %v111 = vld [vmem:[#allocation2 + $0x30] sm:$0xff]
  %v112 = vld [vmem:[#allocation2 + $0x38] sm:$0xff]
  %v113 = vld [vmem:[#allocation2 + $0x40] sm:$0xff]
  %v114 = vld [vmem:[#allocation2 + $0x48] sm:$0xff]
  %v115 = vld [vmem:[#allocation2 + $0x50] sm:$0xff]
  %v116 = vld [vmem:[#allocation2 + $0x58] sm:$0xff]
  %v117 = vld [vmem:[#allocation2 + $0x60] sm:$0xff]
  %v118 = vld [vmem:[#allocation2 + $0x68] sm:$0xff]
  %v119 = vld [vmem:[#allocation2 + $0x70] sm:$0xff]
  %v120 = vld [vmem:[#allocation2 + $0x78] sm:$0xff]
  %121 = vxpose.xlu0.b32.start [1/16] %v99, 128
  %122 = vxpose.xlu0.b32.cont [2/16] %v100, 128
  %123 = vxpose.xlu0.b32.cont [3/16] %v101, 128
  %124 = vxpose.xlu0.b32.cont [4/16] %v102, 128
  %125 = vxpose.xlu0.b32.cont [5/16] %v103, 128
  %126 = vxpose.xlu0.b32.cont [6/16] %v104, 128
  %127 = vxpose.xlu0.b32.cont [7/16] 0.0, 128
  %128 = vxpose.xlu0.b32.cont [8/16] 0.0, 128
  %129 = vxpose.xlu0.b32.cont [9/16] 0.0, 128
  %130 = vxpose.xlu0.b32.cont [10/16] 0.0, 128
  %131 = vxpose.xlu0.b32.cont [11/16] 0.0, 128
  %132 = vxpose.xlu0.b32.cont [12/16] 0.0, 128
  %133 = vxpose.xlu0.b32.cont [13/16] 0.0, 128
  %134 = vxpose.xlu0.b32.cont [14/16] 0.0, 128
  %135 = vxpose.xlu0.b32.cont [15/16] 0.0, 128
  %136 = vxpose.xlu0.b32.end [16/16] 0.0, 128
  %v137 = vpop.trf.xlu0
  %v138 = vpop.trf.xlu0
  %v139 = vpop.trf.xlu0
  %v140 = vpop.trf.xlu0
  %v141 = vpop.trf.xlu0
  %v142 = vpop.trf.xlu0
  %v143 = vpop.trf.xlu0
  %v144 = vpop.trf.xlu0
  %v145 = vpop.trf.xlu0
  %v146 = vpop.trf.xlu0
  %v147 = vpop.trf.xlu0
  %v148 = vpop.trf.xlu0
  %v149 = vpop.trf.xlu0
  %v150 = vpop.trf.xlu0
  %v151 = vpop.trf.xlu0
  %v152 = vpop.trf.xlu0
  %vm153 = vcmask 392192
  %v155 = vsel %vm153, %v137, 0
  %v158 = vsel %vm153, %v138, 0
  %v161 = vsel %vm153, %v139, 0
  %v164 = vsel %vm153, %v140, 0
  %v167 = vsel %vm153, %v141, 0
  %v170 = vsel %vm153, %v142, 0
  %v173 = vsel %vm153, %v143, 0
  %v176 = vsel %vm153, %v144, 0
  %v179 = vsel %vm153, %v145, 0
  %v182 = vsel %vm153, %v146, 0
  %v185 = vsel %vm153, %v147, 0
  %v188 = vsel %vm153, %v148, 0
  %v191 = vsel %vm153, %v149, 0
  %v194 = vsel %vm153, %v150, 0
  %v197 = vsel %vm153, %v151, 0
  %v200 = vsel %vm153, %v152, 0
  %202 = vmatprep.subr.mxu0 0.0
  %203 = vmatpush1.msra.mxu0 0.0
  %204 = vmatprep.subr.mxu0 0.0
  %205 = vmatpush1.msra.mxu0 0.0
  %206 = vmatprep.subr.mxu0 0.0
  %207 = vmatpush1.msra.mxu0 0.0
  %208 = vmatprep.subr.mxu0 0.0
  %209 = vmatpush1.msra.mxu0 0.0
  %210 = vmatprep.subr.mxu0 0.0
  %211 = vmatpush1.msra.mxu0 0.0
  %212 = vmatprep.subr.mxu0 0.0
  %213 = vmatpush1.msra.mxu0 0.0
  %214 = vmatprep.subr.mxu0 0.0
  %215 = vmatpush1.msra.mxu0 0.0
  %216 = vmatprep.subr.mxu0 0.0
  %217 = vmatpush1.msra.mxu0 0.0
  %218 = vmatprep.subr.mxu0 0.0
  %219 = vmatpush1.msra.mxu0 0.0
  %220 = vmatprep.subr.mxu0 0.0
  %221 = vmatpush1.msra.mxu0 0.0
  %222 = vmatprep.subr.mxu0 0.0
  %223 = vmatpush1.msra.mxu0 %v60
  %224 = vmatprep.subr.mxu0 0.0
  %225 = vmatpush1.msra.mxu0 %v59
  %226 = vmatprep.subr.mxu0 0.0
  %227 = vmatpush1.msra.mxu0 %v58
  %228 = vmatprep.subr.mxu0 0.0
  %229 = vmatpush1.msra.mxu0 %v57
  %230 = vmatprep.subr.mxu0 0.0
  %231 = vmatpush1.msra.mxu0 %v56
  %232 = vmatprep.subr.mxu0 0.0
  %233 = vmatpush1.msra.mxu0 %v55
  %234 = vmatprep.subr.mxu0 0.0
  %235 = vmatpush2.msra.mxu0 0.0
  %236 = vmatprep.subr.mxu0 0.0
  %237 = vmatpush2.msra.mxu0 0.0
  %238 = vmatprep.subr.mxu0 0.0
  %239 = vmatpush2.msra.mxu0 0.0
  %240 = vmatprep.subr.mxu0 0.0
  %241 = vmatpush2.msra.mxu0 0.0
  %242 = vmatprep.subr.mxu0 0.0
  %243 = vmatpush2.msra.mxu0 0.0
  %244 = vmatprep.subr.mxu0 0.0
  %245 = vmatpush2.msra.mxu0 0.0
  %246 = vmatprep.subr.mxu0 0.0
  %247 = vmatpush2.msra.mxu0 0.0
  %248 = vmatprep.subr.mxu0 0.0
  %249 = vmatpush2.msra.mxu0 0.0
  %250 = vmatprep.subr.mxu0 0.0
  %251 = vmatpush2.msra.mxu0 0.0
  %252 = vmatprep.subr.mxu0 0.0
  %253 = vmatpush2.msra.mxu0 0.0
  %254 = vmatprep.subr.mxu0 0.0
  %255 = vmatpush2.msra.mxu0 0.0
  %256 = vmatprep.subr.mxu0 0.0
  %257 = vmatpush2.msra.mxu0 0.0
  %258 = vmatprep.subr.mxu0 0.0
  %259 = vmatpush2.msra.mxu0 0.0
  %260 = vmatprep.subr.mxu0 0.0
  %261 = vmatpush2.msra.mxu0 0.0
  %262 = vmatprep.subr.mxu0 0.0
  %263 = vmatpush2.msra.mxu0 0.0
  %264 = vmatprep.subr.mxu0 0.0
  %265 = vmatpush2.msra.mxu0 0.0
  %266 = vmatprep.mubr.f32.mxu0 0.0
  %267 = vmatmul.mubr.f32.gmra.mxu0 %v155
  %v268 = vpop.f32.mrf.mxu0
  %v269 = vadd.f32 0.0, %v268
  %v270 = vpop.f32.mrf.mxu0
  %271 = vmatprep.mubr.f32.mxu0 0.0
  %272 = vmatmul.mubr.f32.gmra.mxu0 %v158
  %v273 = vpop.f32.mrf.mxu0
  %v274 = vadd.f32 0.0, %v273
  %v275 = vpop.f32.mrf.mxu0
  %276 = vmatprep.mubr.f32.mxu0 0.0
  %277 = vmatmul.mubr.f32.gmra.mxu0 %v161
  %v278 = vpop.f32.mrf.mxu0
  %v279 = vadd.f32 0.0, %v278
  %v280 = vpop.f32.mrf.mxu0
  %281 = vmatprep.mubr.f32.mxu0 0.0
  %282 = vmatmul.mubr.f32.gmra.mxu0 %v164
  %v283 = vpop.f32.mrf.mxu0
  %v284 = vadd.f32 0.0, %v283
  %v285 = vpop.f32.mrf.mxu0
  %286 = vmatprep.mubr.f32.mxu0 0.0
  %287 = vmatmul.mubr.f32.gmra.mxu0 %v167
  %v288 = vpop.f32.mrf.mxu0
  %v289 = vadd.f32 0.0, %v288
  %v290 = vpop.f32.mrf.mxu0
  %291 = vmatprep.mubr.f32.mxu0 0.0
  %292 = vmatmul.mubr.f32.gmra.mxu0 %v170
  %v293 = vpop.f32.mrf.mxu0
  %v294 = vadd.f32 0.0, %v293
  %v295 = vpop.f32.mrf.mxu0
  %296 = vmatprep.mubr.f32.mxu0 0.0
  %297 = vmatmul.mubr.f32.gmra.mxu0 %v173
  %v298 = vpop.f32.mrf.mxu0
  %v299 = vadd.f32 0.0, %v298
  %v300 = vpop.f32.mrf.mxu0
  %301 = vmatprep.mubr.f32.mxu0 0.0
  %302 = vmatmul.mubr.f32.gmra.mxu0 %v176
  %v303 = vpop.f32.mrf.mxu0
  %v304 = vadd.f32 0.0, %v303
  %v305 = vpop.f32.mrf.mxu0
  %306 = vmatprep.mubr.f32.mxu0 0.0
  %307 = vmatmul.mubr.f32.gmra.mxu0 %v179
  %v308 = vpop.f32.mrf.mxu0
  %v309 = vadd.f32 0.0, %v308
  %v310 = vpop.f32.mrf.mxu0
  %311 = vmatprep.mubr.f32.mxu0 0.0
  %312 = vmatmul.mubr.f32.gmra.mxu0 %v182
  %v313 = vpop.f32.mrf.mxu0
  %v314 = vadd.f32 0.0, %v313
  %v315 = vpop.f32.mrf.mxu0
  %316 = vmatprep.mubr.f32.mxu0 0.0
  %317 = vmatmul.mubr.f32.gmra.mxu0 %v185
  %v318 = vpop.f32.mrf.mxu0
  %v319 = vadd.f32 0.0, %v318
  %v320 = vpop.f32.mrf.mxu0
  %321 = vmatprep.mubr.f32.mxu0 0.0
  %322 = vmatmul.mubr.f32.gmra.mxu0 %v188
  %v323 = vpop.f32.mrf.mxu0
  %v324 = vadd.f32 0.0, %v323
  %v325 = vpop.f32.mrf.mxu0
  %326 = vmatprep.mubr.f32.mxu0 0.0
  %327 = vmatmul.mubr.f32.gmra.mxu0 %v191
  %v328 = vpop.f32.mrf.mxu0
  %v329 = vadd.f32 0.0, %v328
  %v330 = vpop.f32.mrf.mxu0
  %331 = vmatprep.mubr.f32.mxu0 0.0
  %332 = vmatmul.mubr.f32.gmra.mxu0 %v194
  %v333 = vpop.f32.mrf.mxu0
  %v334 = vadd.f32 0.0, %v333
  %v335 = vpop.f32.mrf.mxu0
  %336 = vmatprep.mubr.f32.mxu0 0.0
  %337 = vmatmul.mubr.f32.gmra.mxu0 %v197
  %v338 = vpop.f32.mrf.mxu0
  %v339 = vadd.f32 0.0, %v338
  %v340 = vpop.f32.mrf.mxu0
  %341 = vmatprep.mubr.f32.mxu0 0.0
  %342 = vmatmul.mubr.f32.gmra.mxu0 %v200
  %v343 = vpop.f32.mrf.mxu0
  %v344 = vadd.f32 0.0, %v343
  %v345 = vpop.f32.mrf.mxu0
  %346 = vdwg.mxu0
  %v347 = vadd.f32 %v105, %v269
  %v348 = vadd.f32 %v106, %v274
  %v349 = vadd.f32 %v107, %v279
  %v350 = vadd.f32 %v108, %v284
  %v351 = vadd.f32 %v109, %v289
  %v352 = vadd.f32 %v110, %v294
  %v353 = vadd.f32 %v111, %v299
  %v354 = vadd.f32 %v112, %v304
  %v355 = vadd.f32 %v113, %v309
  %v356 = vadd.f32 %v114, %v314
  %v357 = vadd.f32 %v115, %v319
  %v358 = vadd.f32 %v116, %v324
  %v359 = vadd.f32 %v117, %v329
  %v360 = vadd.f32 %v118, %v334
  %v361 = vadd.f32 %v119, %v339
  %v362 = vadd.f32 %v120, %v344
  %vm363 = vcmask 261120
  %364 = vst.msk [vmem:[#allocation2] sm:$0xff] %vm363, %v347
  %365 = vst.msk [vmem:[#allocation2 + $0x8] sm:$0xff] %vm363, %v348
  %366 = vst.msk [vmem:[#allocation2 + $0x10] sm:$0xff] %vm363, %v349
  %367 = vst.msk [vmem:[#allocation2 + $0x18] sm:$0xff] %vm363, %v350
  %368 = vst.msk [vmem:[#allocation2 + $0x20] sm:$0xff] %vm363, %v351
  %369 = vst.msk [vmem:[#allocation2 + $0x28] sm:$0xff] %vm363, %v352
  %370 = vst.msk [vmem:[#allocation2 + $0x30] sm:$0xff] %vm363, %v353
  %371 = vst.msk [vmem:[#allocation2 + $0x38] sm:$0xff] %vm363, %v354
  %372 = vst.msk [vmem:[#allocation2 + $0x40] sm:$0xff] %vm363, %v355
  %373 = vst.msk [vmem:[#allocation2 + $0x48] sm:$0xff] %vm363, %v356
  %374 = vst.msk [vmem:[#allocation2 + $0x50] sm:$0xff] %vm363, %v357
  %375 = vst.msk [vmem:[#allocation2 + $0x58] sm:$0xff] %vm363, %v358
  %376 = vst.msk [vmem:[#allocation2 + $0x60] sm:$0xff] %vm363, %v359
  %377 = vst.msk [vmem:[#allocation2 + $0x68] sm:$0xff] %vm363, %v360
  %378 = vst.msk [vmem:[#allocation2 + $0x70] sm:$0xff] %vm363, %v361
  %379 = vst.msk [vmem:[#allocation2 + $0x78] sm:$0xff] %vm363, %v362
  %s380 = sld [smem:[#allocation5]]
  %s381 = sld [smem:[#allocation6]]
  %s382 = sadd.s32 %s381, 1
  // While loop
  $region18: #{tpu_custom_call.1} parent=0 // loop_pre_header
    _
  $region19: #{tpu_custom_call.1} parent=0 // loop_header
    %s384 = sphi %s380, %s386
    %p385 = scmp.ge.s32.totalorder %s384, %s382
  $region20: #{tpu_custom_call.1} parent=0 // loop_header_branch
    %388 = sbr.rel (%p385) target = $region24
  $region21: #{tpu_custom_call.1} parent=0 // loop_body
    %v389 = vstv %s384
    %vm390 = vcmp.eq.s32.totalorder %v61, %v389
    %vm391 = vcmp.eq.s32.totalorder %v62, %v389
    %vm392 = vcmp.eq.s32.totalorder %v63, %v389
    %vm393 = vcmp.eq.s32.totalorder %v64, %v389
    %vm394 = vcmp.eq.s32.totalorder %v65, %v389
    %vm395 = vcmp.eq.s32.totalorder %v66, %v389
    %v396 = vsel %vm390, 1, 0
    %v397 = vsel %vm391, 1, 0
    %v398 = vsel %vm392, 1, 0
    %v399 = vsel %vm393, 1, 0
    %v400 = vsel %vm394, 1, 0
    %v401 = vsel %vm395, 1, 0
    %402 = vset.pattern.permute.xlu0 0
    %403 = vperm.xlu0 %402, %v396
    %v404 = vpop.permute.xlu0 %403
    %405 = vset.pattern.permute.xlu0 0
    %406 = vperm.xlu0 %405, %v397
    %v407 = vpop.permute.xlu0 %406
    %408 = vset.pattern.permute.xlu0 0
    %409 = vperm.xlu0 %408, %v398
    %v410 = vpop.permute.xlu0 %409
    %411 = vset.pattern.permute.xlu0 0
    %412 = vperm.xlu0 %411, %v399
    %v413 = vpop.permute.xlu0 %412
    %414 = vset.pattern.permute.xlu0 0
    %415 = vperm.xlu0 %414, %v400
    %v416 = vpop.permute.xlu0 %415
    %417 = vset.pattern.permute.xlu0 0
    %418 = vperm.xlu0 %417, %v401
    %v419 = vpop.permute.xlu0 %418
    %vm420 = vcmp.eq.s32.totalorder %v404, 1
    %vm421 = vcmp.eq.s32.totalorder %v407, 1
    %vm422 = vcmp.eq.s32.totalorder %v410, 1
    %vm423 = vcmp.eq.s32.totalorder %v413, 1
    %vm424 = vcmp.eq.s32.totalorder %v416, 1
    %vm425 = vcmp.eq.s32.totalorder %v419, 1
    %v426 = vsel %vm420, %v55, -inf
    %v427 = vsel %vm421, %v56, -inf
    %v428 = vsel %vm422, %v57, -inf
    %v429 = vsel %vm423, %v58, -inf
    %v430 = vsel %vm424, %v59, -inf
    %v431 = vsel %vm425, %v60, -inf
    %v432 = vsel %vm363, %v426, -inf
    %v433 = vsel %vm363, %v427, -inf
    %v434 = vsel %vm363, %v428, -inf
    %v435 = vsel %vm363, %v429, -inf
    %v436 = vsel %vm363, %v430, -inf
    %v437 = vmax.f32 %v432, %v436
    %v438 = vsel %vm363, %v431, -inf
    %v439 = vmax.f32 %v433, %v438
    %v440 = vmax.f32 %v437, %v439
    %v441 = vmax.f32 %v434, %v435
    %v442 = vmax.f32 %v440, %v441
    %v443 = vrot.slane %v442, 4
    %v444 = vmax.f32 %v442, %v443
    %v445 = vrot.slane %v444, 2
    %v446 = vmax.f32 %v444, %v445
    %v447 = vrot.slane %v446, 1
    %v448 = vmax.f32 %v446, %v447
    %s449 = scalar_lea.vmem [#allocation3], %s384
    %v450 = vld [vmem:[%s449] sm:$0x1]
    %v451 = vmax.f32 %v450, %v448
    %vm452 = vcmask 253952
    %453 = vst.msk [vmem:[%s449] sm:$0x1] %vm452, %v451
  $region22: #{tpu_custom_call.1} parent=0 // loop_footer
    %s386 = sadd.s32 %s384, 1
  $region23: #{tpu_custom_call.1} parent=0 // loop_footer_branch
    %383 = sbr.rel target = $region19
  $region24: #{tpu_custom_call.1} parent=0 // loop_exit
    _
  // Predicated region
  $region25: #{tpu_custom_call.1} parent=0 // pred_check
    %p454 = pneg %p18
  $region26: #{tpu_custom_call.1} parent=0 // pred_check_branch
    %456 = sbr.rel (%p454) target = $region28
  $region27: #{tpu_custom_call.1} parent=0 // pred_region
    %v457 = vld [vmem:[%s4] sm:$0xff]
    %v458 = vld [vmem:[%s4 + $0x8] sm:$0xff]
    %v459 = vld [vmem:[%s4 + $0x10] sm:$0xff]
    %v460 = vld [vmem:[%s4 + $0x18] sm:$0xff]
    %v461 = vld [vmem:[%s4 + $0x20] sm:$0xff]
    %v462 = vld [vmem:[%s4 + $0x28] sm:$0xff]
    %v463 = vld [vmem:[%s4 + $0x30] sm:$0xff]
    %v464 = vld [vmem:[%s4 + $0x38] sm:$0xff]
    %v465 = vld [vmem:[%s4 + $0x40] sm:$0xff]
    %v466 = vld [vmem:[%s4 + $0x48] sm:$0xff]
    %v467 = vld [vmem:[%s4 + $0x50] sm:$0xff]
    %v468 = vld [vmem:[%s4 + $0x58] sm:$0xff]
    %v469 = vld [vmem:[%s4 + $0x60] sm:$0xff]
    %v470 = vld [vmem:[%s4 + $0x68] sm:$0xff]
    %v471 = vld [vmem:[%s4 + $0x70] sm:$0xff]
    %v472 = vld [vmem:[%s4 + $0x78] sm:$0xff]
    %v473 = vld [vmem:[#allocation2] sm:$0xff]
    %v474 = vld [vmem:[#allocation2 + $0x8] sm:$0xff]
    %v475 = vld [vmem:[#allocation2 + $0x10] sm:$0xff]
    %v476 = vld [vmem:[#allocation2 + $0x18] sm:$0xff]
    %v477 = vld [vmem:[#allocation2 + $0x20] sm:$0xff]
    %v478 = vld [vmem:[#allocation2 + $0x28] sm:$0xff]
    %v479 = vld [vmem:[#allocation2 + $0x30] sm:$0xff]
    %v480 = vld [vmem:[#allocation2 + $0x38] sm:$0xff]
    %v481 = vld [vmem:[#allocation2 + $0x40] sm:$0xff]
    %v482 = vld [vmem:[#allocation2 + $0x48] sm:$0xff]
    %v483 = vld [vmem:[#allocation2 + $0x50] sm:$0xff]
    %v484 = vld [vmem:[#allocation2 + $0x58] sm:$0xff]
    %v485 = vld [vmem:[#allocation2 + $0x60] sm:$0xff]
    %v486 = vld [vmem:[#allocation2 + $0x68] sm:$0xff]
    %v487 = vld [vmem:[#allocation2 + $0x70] sm:$0xff]
    %v488 = vld [vmem:[#allocation2 + $0x78] sm:$0xff]
    %489 = vst.msk [vmem:[%s5] sm:$0xff] %vm363, %v473
    %490 = vst.msk [vmem:[%s5 + $0x8] sm:$0xff] %vm363, %v474
    %491 = vst.msk [vmem:[%s5 + $0x10] sm:$0xff] %vm363, %v475
    %492 = vst.msk [vmem:[%s5 + $0x18] sm:$0xff] %vm363, %v476
    %493 = vst.msk [vmem:[%s5 + $0x20] sm:$0xff] %vm363, %v477
    %494 = vst.msk [vmem:[%s5 + $0x28] sm:$0xff] %vm363, %v478
    %495 = vst.msk [vmem:[%s5 + $0x30] sm:$0xff] %vm363, %v479
    %496 = vst.msk [vmem:[%s5 + $0x38] sm:$0xff] %vm363, %v480
    %497 = vst.msk [vmem:[%s5 + $0x40] sm:$0xff] %vm363, %v481
    %498 = vst.msk [vmem:[%s5 + $0x48] sm:$0xff] %vm363, %v482
    %499 = vst.msk [vmem:[%s5 + $0x50] sm:$0xff] %vm363, %v483
    %500 = vst.msk [vmem:[%s5 + $0x58] sm:$0xff] %vm363, %v484
    %501 = vst.msk [vmem:[%s5 + $0x60] sm:$0xff] %vm363, %v485
    %502 = vst.msk [vmem:[%s5 + $0x68] sm:$0xff] %vm363, %v486
    %503 = vst.msk [vmem:[%s5 + $0x70] sm:$0xff] %vm363, %v487
    %504 = vst.msk [vmem:[%s5 + $0x78] sm:$0xff] %vm363, %v488
    %v505 = vld [vmem:[#allocation2] sm:$0xff]
    %v506 = vld [vmem:[#allocation2 + $0x8] sm:$0xff]
    %v507 = vld [vmem:[#allocation2 + $0x10] sm:$0xff]
    %v508 = vld [vmem:[#allocation2 + $0x18] sm:$0xff]
    %v509 = vld [vmem:[#allocation2 + $0x20] sm:$0xff]
    %v510 = vld [vmem:[#allocation2 + $0x28] sm:$0xff]
    %v511 = vld [vmem:[#allocation2 + $0x30] sm:$0xff]
    %v512 = vld [vmem:[#allocation2 + $0x38] sm:$0xff]
    %v513 = vld [vmem:[#allocation2 + $0x40] sm:$0xff]
    %v514 = vld [vmem:[#allocation2 + $0x48] sm:$0xff]
    %v515 = vld [vmem:[#allocation2 + $0x50] sm:$0xff]
    %v516 = vld [vmem:[#allocation2 + $0x58] sm:$0xff]
    %v517 = vld [vmem:[#allocation2 + $0x60] sm:$0xff]
    %v518 = vld [vmem:[#allocation2 + $0x68] sm:$0xff]
    %v519 = vld [vmem:[#allocation2 + $0x70] sm:$0xff]
    %v520 = vld [vmem:[#allocation2 + $0x78] sm:$0xff]
    %v521 = vmax.f32 %v457, 1.0
    %v522 = vmax.f32 %v458, 1.0
    %v523 = vmax.f32 %v459, 1.0
    %v524 = vmax.f32 %v460, 1.0
    %v525 = vmax.f32 %v461, 1.0
    %v526 = vmax.f32 %v462, 1.0
    %v527 = vmax.f32 %v463, 1.0
    %v528 = vmax.f32 %v464, 1.0
    %v529 = vmax.f32 %v465, 1.0
    %v530 = vmax.f32 %v466, 1.0
    %v531 = vmax.f32 %v467, 1.0
    %v532 = vmax.f32 %v468, 1.0
    %v533 = vmax.f32 %v469, 1.0
    %v534 = vmax.f32 %v470, 1.0
    %v535 = vmax.f32 %v471, 1.0
    %v536 = vmax.f32 %v472, 1.0
    %538 = vset.pattern.permute.xlu0 0
    %539 = vperm.xlu0 %538, %v521
    %v540 = vpop.permute.xlu0 %539
    %543 = vset.pattern.permute.xlu0 0
    %544 = vperm.xlu0 %543, %v522
    %v545 = vpop.permute.xlu0 %544
    %548 = vset.pattern.permute.xlu0 0
    %549 = vperm.xlu0 %548, %v523
    %v550 = vpop.permute.xlu0 %549
    %553 = vset.pattern.permute.xlu0 0
    %554 = vperm.xlu0 %553, %v524
    %v555 = vpop.permute.xlu0 %554
    %558 = vset.pattern.permute.xlu0 0
    %559 = vperm.xlu0 %558, %v525
    %v560 = vpop.permute.xlu0 %559
    %563 = vset.pattern.permute.xlu0 0
    %564 = vperm.xlu0 %563, %v526
    %v565 = vpop.permute.xlu0 %564
    %568 = vset.pattern.permute.xlu0 0
    %569 = vperm.xlu0 %568, %v527
    %v570 = vpop.permute.xlu0 %569
    %573 = vset.pattern.permute.xlu0 0
    %574 = vperm.xlu0 %573, %v528
    %v575 = vpop.permute.xlu0 %574
    %578 = vset.pattern.permute.xlu0 0
    %579 = vperm.xlu0 %578, %v529
    %v580 = vpop.permute.xlu0 %579
    %583 = vset.pattern.permute.xlu0 0
    %584 = vperm.xlu0 %583, %v530
    %v585 = vpop.permute.xlu0 %584
    %588 = vset.pattern.permute.xlu0 0
    %589 = vperm.xlu0 %588, %v531
    %v590 = vpop.permute.xlu0 %589
    %593 = vset.pattern.permute.xlu0 0
    %594 = vperm.xlu0 %593, %v532
    %v595 = vpop.permute.xlu0 %594
    %598 = vset.pattern.permute.xlu0 0
    %599 = vperm.xlu0 %598, %v533
    %v600 = vpop.permute.xlu0 %599
    %603 = vset.pattern.permute.xlu0 0
    %604 = vperm.xlu0 %603, %v534
    %v605 = vpop.permute.xlu0 %604
    %608 = vset.pattern.permute.xlu0 0
    %609 = vperm.xlu0 %608, %v535
    %v610 = vpop.permute.xlu0 %609
    %613 = vset.pattern.permute.xlu0 0
    %614 = vperm.xlu0 %613, %v536
    %v615 = vpop.permute.xlu0 %614
    %v617 = vrcp.pop %v540
    %v618 = vmul.f32 %v505, %v617
    %v619 = vrcp.pop %v545
    %v620 = vmul.f32 %v506, %v619
    %v621 = vrcp.pop %v550
    %v622 = vmul.f32 %v507, %v621
    %v623 = vrcp.pop %v555
    %v624 = vmul.f32 %v508, %v623
    %v625 = vrcp.pop %v560
    %v626 = vmul.f32 %v509, %v625
    %v627 = vrcp.pop %v565
    %v628 = vmul.f32 %v510, %v627
    %v629 = vrcp.pop %v570
    %v630 = vmul.f32 %v511, %v629
    %v631 = vrcp.pop %v575
    %v632 = vmul.f32 %v512, %v631
    %v633 = vrcp.pop %v580
    %v634 = vmul.f32 %v513, %v633
    %v635 = vrcp.pop %v585
    %v636 = vmul.f32 %v514, %v635
    %v637 = vrcp.pop %v590
    %v638 = vmul.f32 %v515, %v637
    %v639 = vrcp.pop %v595
    %v640 = vmul.f32 %v516, %v639
    %v641 = vrcp.pop %v600
    %v642 = vmul.f32 %v517, %v641
    %v643 = vrcp.pop %v605
    %v644 = vmul.f32 %v518, %v643
    %v645 = vrcp.pop %v610
    %v646 = vmul.f32 %v519, %v645
    %v647 = vrcp.pop %v615
    %v648 = vmul.f32 %v520, %v647
    %s649 = scalar_lea.vmem %s5, 128
    %650 = vst.msk [vmem:[%s649] sm:$0xff] %vm363, %v618
    %651 = vst.msk [vmem:[%s649 + $0x8] sm:$0xff] %vm363, %v620
    %652 = vst.msk [vmem:[%s649 + $0x10] sm:$0xff] %vm363, %v622
    %653 = vst.msk [vmem:[%s649 + $0x18] sm:$0xff] %vm363, %v624
    %654 = vst.msk [vmem:[%s649 + $0x20] sm:$0xff] %vm363, %v626
    %655 = vst.msk [vmem:[%s649 + $0x28] sm:$0xff] %vm363, %v628
    %656 = vst.msk [vmem:[%s649 + $0x30] sm:$0xff] %vm363, %v630
    %657 = vst.msk [vmem:[%s649 + $0x38] sm:$0xff] %vm363, %v632
    %658 = vst.msk [vmem:[%s649 + $0x40] sm:$0xff] %vm363, %v634
    %659 = vst.msk [vmem:[%s649 + $0x48] sm:$0xff] %vm363, %v636
    %660 = vst.msk [vmem:[%s649 + $0x50] sm:$0xff] %vm363, %v638
    %661 = vst.msk [vmem:[%s649 + $0x58] sm:$0xff] %vm363, %v640
    %662 = vst.msk [vmem:[%s649 + $0x60] sm:$0xff] %vm363, %v642
    %663 = vst.msk [vmem:[%s649 + $0x68] sm:$0xff] %vm363, %v644
    %664 = vst.msk [vmem:[%s649 + $0x70] sm:$0xff] %vm363, %v646
    %665 = vst.msk [vmem:[%s649 + $0x78] sm:$0xff] %vm363, %v648
    %vm666 = vcmp.gt.f32.partialorder %v457, 0.0
    %vm667 = vcmp.gt.f32.partialorder %v458, 0.0
    %vm668 = vcmp.gt.f32.partialorder %v459, 0.0
    %vm669 = vcmp.gt.f32.partialorder %v460, 0.0
    %vm670 = vcmp.gt.f32.partialorder %v461, 0.0
    %vm671 = vcmp.gt.f32.partialorder %v462, 0.0
    %vm672 = vcmp.gt.f32.partialorder %v463, 0.0
    %vm673 = vcmp.gt.f32.partialorder %v464, 0.0
    %vm674 = vcmp.gt.f32.partialorder %v465, 0.0
    %vm675 = vcmp.gt.f32.partialorder %v466, 0.0
    %vm676 = vcmp.gt.f32.partialorder %v467, 0.0
    %vm677 = vcmp.gt.f32.partialorder %v468, 0.0
    %vm678 = vcmp.gt.f32.partialorder %v469, 0.0
    %vm679 = vcmp.gt.f32.partialorder %v470, 0.0
    %vm680 = vcmp.gt.f32.partialorder %v471, 0.0
    %vm681 = vcmp.gt.f32.partialorder %v472, 0.0
    %v682 = vld [vmem:[#allocation3] sm:$0xff]
    %v683 = vld [vmem:[#allocation3 + $0x8] sm:$0xff]
    %v684 = vld [vmem:[#allocation3 + $0x10] sm:$0xff]
    %v685 = vld [vmem:[#allocation3 + $0x18] sm:$0xff]
    %v686 = vld [vmem:[#allocation3 + $0x20] sm:$0xff]
    %v687 = vld [vmem:[#allocation3 + $0x28] sm:$0xff]
    %v688 = vld [vmem:[#allocation3 + $0x30] sm:$0xff]
    %v689 = vld [vmem:[#allocation3 + $0x38] sm:$0xff]
    %v690 = vld [vmem:[#allocation3 + $0x40] sm:$0xff]
    %v691 = vld [vmem:[#allocation3 + $0x48] sm:$0xff]
    %v692 = vld [vmem:[#allocation3 + $0x50] sm:$0xff]
    %v693 = vld [vmem:[#allocation3 + $0x58] sm:$0xff]
    %v694 = vld [vmem:[#allocation3 + $0x60] sm:$0xff]
    %v695 = vld [vmem:[#allocation3 + $0x68] sm:$0xff]
    %v696 = vld [vmem:[#allocation3 + $0x70] sm:$0xff]
    %v697 = vld [vmem:[#allocation3 + $0x78] sm:$0xff]
    %v698 = vsel %vm666, 1, 0
    %v699 = vsel %vm667, 1, 0
    %v700 = vsel %vm668, 1, 0
    %v701 = vsel %vm669, 1, 0
    %v702 = vsel %vm670, 1, 0
    %v703 = vsel %vm671, 1, 0
    %v704 = vsel %vm672, 1, 0
    %v705 = vsel %vm673, 1, 0
    %v706 = vsel %vm674, 1, 0
    %v707 = vsel %vm675, 1, 0
    %v708 = vsel %vm676, 1, 0
    %v709 = vsel %vm677, 1, 0
    %v710 = vsel %vm678, 1, 0
    %v711 = vsel %vm679, 1, 0
    %v712 = vsel %vm680, 1, 0
    %v713 = vsel %vm681, 1, 0
    %714 = vset.pattern.permute.xlu0 0
    %715 = vperm.xlu0 %714, %v698
    %v716 = vpop.permute.xlu0 %715
    %717 = vset.pattern.permute.xlu0 0
    %718 = vperm.xlu0 %717, %v699
    %v719 = vpop.permute.xlu0 %718
    %720 = vset.pattern.permute.xlu0 0
    %721 = vperm.xlu0 %720, %v700
    %v722 = vpop.permute.xlu0 %721
    %723 = vset.pattern.permute.xlu0 0
    %724 = vperm.xlu0 %723, %v701
    %v725 = vpop.permute.xlu0 %724
    %726 = vset.pattern.permute.xlu0 0
    %727 = vperm.xlu0 %726, %v702
    %v728 = vpop.permute.xlu0 %727
    %729 = vset.pattern.permute.xlu0 0
    %730 = vperm.xlu0 %729, %v703
    %v731 = vpop.permute.xlu0 %730
    %732 = vset.pattern.permute.xlu0 0
    %733 = vperm.xlu0 %732, %v704
    %v734 = vpop.permute.xlu0 %733
    %735 = vset.pattern.permute.xlu0 0
    %736 = vperm.xlu0 %735, %v705
    %v737 = vpop.permute.xlu0 %736
    %738 = vset.pattern.permute.xlu0 0
    %739 = vperm.xlu0 %738, %v706
    %v740 = vpop.permute.xlu0 %739
    %741 = vset.pattern.permute.xlu0 0
    %742 = vperm.xlu0 %741, %v707
    %v743 = vpop.permute.xlu0 %742
    %744 = vset.pattern.permute.xlu0 0
    %745 = vperm.xlu0 %744, %v708
    %v746 = vpop.permute.xlu0 %745
    %747 = vset.pattern.permute.xlu0 0
    %748 = vperm.xlu0 %747, %v709
    %v749 = vpop.permute.xlu0 %748
    %750 = vset.pattern.permute.xlu0 0
    %751 = vperm.xlu0 %750, %v710
    %v752 = vpop.permute.xlu0 %751
    %753 = vset.pattern.permute.xlu0 0
    %754 = vperm.xlu0 %753, %v711
    %v755 = vpop.permute.xlu0 %754
    %756 = vset.pattern.permute.xlu0 0
    %757 = vperm.xlu0 %756, %v712
    %v758 = vpop.permute.xlu0 %757
    %759 = vset.pattern.permute.xlu0 0
    %760 = vperm.xlu0 %759, %v713
    %v761 = vpop.permute.xlu0 %760
    %vm762 = vcmp.eq.s32.totalorder %v716, 1
    %vm763 = vcmp.eq.s32.totalorder %v719, 1
    %vm764 = vcmp.eq.s32.totalorder %v722, 1
    %vm765 = vcmp.eq.s32.totalorder %v725, 1
    %vm766 = vcmp.eq.s32.totalorder %v728, 1
    %vm767 = vcmp.eq.s32.totalorder %v731, 1
    %vm768 = vcmp.eq.s32.totalorder %v734, 1
    %vm769 = vcmp.eq.s32.totalorder %v737, 1
    %vm770 = vcmp.eq.s32.totalorder %v740, 1
    %vm771 = vcmp.eq.s32.totalorder %v743, 1
    %vm772 = vcmp.eq.s32.totalorder %v746, 1
    %vm773 = vcmp.eq.s32.totalorder %v749, 1
    %vm774 = vcmp.eq.s32.totalorder %v752, 1
    %vm775 = vcmp.eq.s32.totalorder %v755, 1
    %vm776 = vcmp.eq.s32.totalorder %v758, 1
    %vm777 = vcmp.eq.s32.totalorder %v761, 1
    %v778 = vsel %vm762, %v682, 0.0
    %v779 = vsel %vm763, %v683, 0.0
    %v780 = vsel %vm764, %v684, 0.0
    %v781 = vsel %vm765, %v685, 0.0
    %v782 = vsel %vm766, %v686, 0.0
    %v783 = vsel %vm767, %v687, 0.0
    %v784 = vsel %vm768, %v688, 0.0
    %v785 = vsel %vm769, %v689, 0.0
    %v786 = vsel %vm770, %v690, 0.0
    %v787 = vsel %vm771, %v691, 0.0
    %v788 = vsel %vm772, %v692, 0.0
    %v789 = vsel %vm773, %v693, 0.0
    %v790 = vsel %vm774, %v694, 0.0
    %v791 = vsel %vm775, %v695, 0.0
    %v792 = vsel %vm776, %v696, 0.0
    %v793 = vsel %vm777, %v697, 0.0
    %s794 = scalar_lea.vmem %s5, 256
    %795 = vst.msk [vmem:[%s794] sm:$0xff] %vm363, %v778
    %796 = vst.msk [vmem:[%s794 + $0x8] sm:$0xff] %vm363, %v779
    %797 = vst.msk [vmem:[%s794 + $0x10] sm:$0xff] %vm363, %v780
    %798 = vst.msk [vmem:[%s794 + $0x18] sm:$0xff] %vm363, %v781
    %799 = vst.msk [vmem:[%s794 + $0x20] sm:$0xff] %vm363, %v782
    %800 = vst.msk [vmem:[%s794 + $0x28] sm:$0xff] %vm363, %v783
    %801 = vst.msk [vmem:[%s794 + $0x30] sm:$0xff] %vm363, %v784
    %802 = vst.msk [vmem:[%s794 + $0x38] sm:$0xff] %vm363, %v785
    %803 = vst.msk [vmem:[%s794 + $0x40] sm:$0xff] %vm363, %v786
    %804 = vst.msk [vmem:[%s794 + $0x48] sm:$0xff] %vm363, %v787
    %805 = vst.msk [vmem:[%s794 + $0x50] sm:$0xff] %vm363, %v788
    %806 = vst.msk [vmem:[%s794 + $0x58] sm:$0xff] %vm363, %v789
    %807 = vst.msk [vmem:[%s794 + $0x60] sm:$0xff] %vm363, %v790
    %808 = vst.msk [vmem:[%s794 + $0x68] sm:$0xff] %vm363, %v791
    %809 = vst.msk [vmem:[%s794 + $0x70] sm:$0xff] %vm363, %v792
    %810 = vst.msk [vmem:[%s794 + $0x78] sm:$0xff] %vm363, %v793
  $region28: #{tpu_custom_call.1} parent=0 // pred_fallthru
    _
  // Predicated region
  $region29: #{tpu_custom_call.1} parent=0 // pred_check
    _
  $region30: #{tpu_custom_call.1} parent=0 // pred_check_branch
    %812 = sbr.rel (0) target = $region32
  $region31: #{tpu_custom_call.1} parent=0 // pred_region
    _
  $region32: #{tpu_custom_call.1} parent=0 // pred_fallthru
    _
  // Predicated region
  $region33: #{tpu_custom_call.1} parent=0 // pred_check
    _
  $region34: #{tpu_custom_call.1} parent=0 // pred_check_branch
    %814 = sbr.rel (0) target = $region36
  $region35: #{tpu_custom_call.1} parent=0 // pred_region
    _
  $region36: #{tpu_custom_call.1} parent=0 // pred_fallthru
    _

</llo_original>
